<compile_context>
chip_gen: v6e
topology: v6e:2x2x1
jax: 0.10.0
libtpu: 0.0.40
codegen_flags: <defaults>
</compile_context>

<pallas_src>
import jax
import jax.numpy as jnp
from jax.experimental import pallas as pl
from jax.experimental.pallas import tpu as pltpu


def _gated_conv_kernel(x_ref, w_ref, o_ref):
    # x_ref: (Rb, Lb)   w_ref: (Rb, 1)   o_ref: (Rb, Lb)
    # (Rb, 1) broadcasts across the lane axis; x.dtype * f32 promotes like
    # torch.mul, then cast to the requested output dtype.
    o_ref[...] = (x_ref[...] * w_ref[...]).astype(o_ref.dtype)


def _chip_params():
    """Per-generation (per-step in+out byte budget, vmem_limit_bytes)."""
    try:
        kind = jax.devices()[0].device_kind.lower().replace(" ", "")
    except Exception:
        kind = ""
    if "v7" in kind or "7x" in kind:
        # v7x: 64 MiB physical VMEM, ~3.2 TB/s HBM. ~6 MiB in + 6 MiB out per
        # step drops the ~0.35 us fixed grid-step cost to ~5%; double-buffered
        # footprint ~24 MiB, comfortably under an explicit 48 MiB scoped cap.
        return 12 << 20, 48 << 20
    if "v6" in kind:
        # v6e: 128 MiB physical (32 MiB default scoped), ~1.4 TB/s HBM.
        return 12 << 20, 64 << 20
    if "v5e" in kind or "v5lite" in kind:
        # v5e: 16 MiB default scoped VMEM; ~2 MiB in + ~2 MiB out per step,
        # double-buffered ~8 MiB, stays inside the default limit.
        return 4 << 20, None
    # Unknown / older chip: conservative, default scoped VMEM.
    return 4 << 20, None


def _pick_blocks(R, HW, bytes_per_elem, io_budget_bytes):
    """Choose (Rb, Lb) respecting the (8, 128) tiling rule.

    bytes_per_elem counts input + output itemsize so the budget reflects the
    true per-step HBM traffic (e.g. bf16 in -> f32 out is 6 B/elem).
    """
    LANE_MAX = 32 * 1024                            # lane block cap (x128)
    target_elems = max(8 * 128, io_budget_bytes // max(1, bytes_per_elem))

    # Lane (spatial) block: multiple of 128, or the full extent.
    if HW % 128 == 0:
        Lb = min(HW, LANE_MAX)
    elif HW > LANE_MAX:
        Lb = LANE_MAX                               # last block partial/masked
    else:
        Lb = HW                                     # full extent (masked vst if <128-mult)

    # Row block: full extent, or a multiple of 8 within the byte budget.
    row_budget = max(8, target_elems // max(1, Lb))
    if R <= row_budget:
        Rb = R
    else:
        Rb = max(8, (row_budget // 8) * 8)
    return Rb, Lb


def gated_convolution(x, weight, *, out_dtype=None, donate_x=False):
    """x: (N, C, H, W); weight: (C, 1, 1) (channel_first). Returns x * weight.

    out_dtype=None -> strict torch promotion (bf16 * f32 -> f32). Pass
    out_dtype=x.dtype to keep bf16 outputs and cut store traffic by ~1/3.
    donate_x=True aliases the output onto x's buffer when dtypes match.
    """
    N, C, H, W = x.shape
    HW = H * W
    R = N * C

    if out_dtype is None:
        out_dtype = jnp.result_type(x.dtype, weight.dtype)
    out_dtype = jnp.dtype(out_dtype)

    # Fold batch into the row (sublane) axis; reshape of a contiguous NCHW
    # array is free at the XLA level. Weight stays in param dtype (f32) so the
    # in-kernel multiply promotes exactly like torch.mul.
    x2 = x.reshape(R, HW)
    w_rows = jnp.tile(weight.reshape(C, 1), (N, 1))          # (R, 1) column

    io_budget, vmem_limit = _chip_params()
    bytes_per_elem = jnp.dtype(x.dtype).itemsize + out_dtype.itemsize
    Rb, Lb = _pick_blocks(R, HW, bytes_per_elem, io_budget)
    grid = (pl.cdiv(R, Rb), pl.cdiv(HW, Lb))

    x_bytes = x.size * jnp.dtype(x.dtype).itemsize
    out_bytes = x.size * out_dtype.itemsize
    w_bytes = R * jnp.dtype(weight.dtype).itemsize
    cost = pl.CostEstimate(
        flops=x.size, transcendentals=0,
        bytes_accessed=x_bytes + out_bytes + w_bytes,
    )

    aliases = {0: 0} if (donate_x and out_dtype == jnp.dtype(x.dtype)) else {}

    out2 = pl.pallas_call(
        _gated_conv_kernel,
        out_shape=jax.ShapeDtypeStruct((R, HW), out_dtype),
        grid_spec=pltpu.PrefetchScalarGridSpec(
            num_scalar_prefetch=0,
            grid=grid,
            in_specs=[
                # x: (Rb, Lb) lane-dense slab.
                pl.BlockSpec((Rb, Lb), lambda r, l: (r, l)),
                # weight: (Rb, 1) VMEM column, broadcast in-kernel on the VPU.
                pl.BlockSpec((Rb, 1), lambda r, l: (r, 0)),
            ],
            out_specs=pl.BlockSpec((Rb, Lb), lambda r, l: (r, l)),
        ),
        compiler_params=pltpu.CompilerParams(
            dimension_semantics=("parallel", "parallel"),
            vmem_limit_bytes=vmem_limit,
        ),
        cost_estimate=cost,
        input_output_aliases=aliases,
    )(x2, w_rows)

    return out2.reshape(N, C, H, W)


if __name__ == "__main__":
    key = jax.random.PRNGKey(0)
    kx, kw = jax.random.split(key)

    # Shapes implied by the module (channel_first NCHW input).
    N, C, H, W = 2, 4, 16, 16
    x = jax.random.normal(kx, (N, C, H, W), dtype=jnp.float32)

    # Module __init__: weight = ones(C, 1, 1); nn.init.ones_ keeps it ones.
    weight = jnp.ones((C, 1, 1), dtype=jnp.float32)

    out = jax.block_until_ready(gated_convolution(x, weight))
    ref = x * weight.reshape(1, C, 1, 1)
    assert out.shape == x.shape
    assert out.dtype == ref.dtype
    assert jnp.allclose(out, ref, atol=1e-6), "mismatch vs reference (ones weight)"

    # Extra correctness check: random weight, C not a multiple of 8 and HW not
    # a multiple of 128, exercising masked partial blocks and the broadcast.
    k1, k2 = jax.random.split(kw)
    N2, C2, H2, W2 = 2, 5, 9, 11
    x2 = jax.random.normal(k1, (N2, C2, H2, W2), dtype=jnp.float32)
    w2 = jax.random.normal(k2, (C2, 1, 1), dtype=jnp.float32)
    out2 = jax.block_until_ready(gated_convolution(x2, w2))
    ref2 = x2 * w2.reshape(1, C2, 1, 1)
    assert jnp.allclose(out2, ref2, atol=1e-5, rtol=1e-5), "mismatch vs reference (random weight)"

    print("KERNEL_OK")
</pallas_src>

<mosaic_0001>
module attributes {stable_mosaic.version = 11 : i64} {
  func.func @_gated_conv_kernel(%arg0: i32, %arg1: i32, %arg2: memref<8x256xf32, #tpu.memory_space<vmem>>, %arg3: memref<8x1xf32, #tpu.memory_space<vmem>>, %arg4: memref<8x256xf32, #tpu.memory_space<vmem>>) attributes {dimension_semantics = [#tpu.dimension_semantics<parallel>, #tpu.dimension_semantics<parallel>], iteration_bounds = array<i64: 1, 1>, scalar_prefetch = 0 : i64, scratch_operands = 0 : i64, tpu.core_type = #tpu.core_type<tc>, window_params = [{transform_indices = @transform_0, window_bounds = array<i64: 8, 256>}, {transform_indices = @transform_1, window_bounds = array<i64: 8, 1>}, {transform_indices = @transform_2, window_bounds = array<i64: 8, 256>}]} {
    %c0 = arith.constant 0 : index
    %c0_0 = arith.constant 0 : index
    %0 = vector.load %arg2[%c0, %c0_0] : memref<8x256xf32, #tpu.memory_space<vmem>>, vector<8x256xf32>
    %c0_1 = arith.constant 0 : index
    %c0_2 = arith.constant 0 : index
    %1 = vector.load %arg3[%c0_1, %c0_2] : memref<8x1xf32, #tpu.memory_space<vmem>>, vector<8x1xf32>
    %2 = vector.broadcast %1 : vector<8x1xf32> to vector<8x256xf32>
    %3 = arith.mulf %0, %2 : vector<8x256xf32>
    %c0_3 = arith.constant 0 : index
    %c0_4 = arith.constant 0 : index
    %4 = vector.load %arg4[%c0_3, %c0_4] : memref<8x256xf32, #tpu.memory_space<vmem>>, vector<8x256xf32>
    tpu.vector_store %arg4[%c0_3, %c0_4], %3 {strides = array<i32>} : memref<8x256xf32, #tpu.memory_space<vmem>>, vector<8x256xf32>,
    return
  }
  func.func @transform_0(%arg0: i32, %arg1: i32) -> (i32, i32) {
    %c0_i32 = arith.constant 0 : i32
    return %arg0, %arg1 : i32, i32
  }
  func.func @transform_1(%arg0: i32, %arg1: i32) -> (i32, i32) {
    %c0_i32 = arith.constant 0 : i32
    %c0_i32_0 = arith.constant 0 : i32
    return %arg0, %c0_i32 : i32, i32
  }
  func.func @transform_2(%arg0: i32, %arg1: i32) -> (i32, i32) {
    %c0_i32 = arith.constant 0 : i32
    return %arg0, %arg1 : i32, i32
  }
}

</mosaic_0001>

<llo_original>
// kernel: tpu_custom_call.1
$region0: #{tpu_custom_call.1}
  #allocation0 [shape = 'u32[]', space=smem, size = 0x4, offset = 0x4, fixed_abs, tag = 'smem constant byte address 0x4 - core index']
  #allocation1 [shape = 'u32[144,128]{1,0:T(1,128)}', space=vmem, size = 0x12000, scoped, tag = 'internal scratch']
  %s0 = inlined_call_operand.hbm [shape: f32[8,256], index: 0, kind: input, shape index: {}]
  %s1 = inlined_call_operand.vmem [shape: f32[8,1], index: 1, kind: input, shape index: {}]
  %s2 = inlined_call_operand.hbm [shape: f32[8,256], index: 2, kind: output, shape index: {}]
  %s3 = sld [smem:[#allocation0]]
  $region22: #{tpu_custom_call.1} parent=0
    _
  %s5 = ssub.s32 1, %s3
  %s6 = scalar_select 0, %s5, %s3
  $region1: #{tpu_custom_call.1} parent=0
    #allocation2 [shape = 'u8[8192]{0}', space=vmem, size = 0x2000, scoped, tag = 'input window, operand 0, single buffered']
    #allocation3 [shape = 's32[1]{0}', space=sflag, size = 0x4, scoped, tag = 'scoped memory for tpu_custom_call.1']
    #allocation4 [shape = 's32[1]{0}', space=sflag, size = 0x4, scoped, tag = 'scoped memory for tpu_custom_call.1']
    #allocation5 [shape = 'u8[8192]{0}', space=vmem, size = 0x2000, scoped, tag = 'output window, operand 0, single buffered']
    %7 = vsyncpa [#allocation3], 0
    %8 = vsyncpa [#allocation4], 0
    // Predicated region
    $region2: #{tpu_custom_call.1} parent=1 // pred_check
      _
    $region3: #{tpu_custom_call.1} parent=1 // pred_check_branch
      %10 = sbr.rel (0) target = $region5
    $region4: #{tpu_custom_call.1} parent=1 // pred_region
      %s12 = ssub.s32 256, 256
      %13 = vsyncadd [#allocation3], %s12
      %s15 = sshll.u32 [#allocation2], 4
      %s16 = int_to_ptr.vmem [resolvable:$true] %s15
      %18 = dma.hbm_to_vmem [thread:$0]  %s0, 256, %s16, [#allocation3]
    $region5: #{tpu_custom_call.1} parent=1 // pred_fallthru
      _
    // Predicated region
    $region6: #{tpu_custom_call.1} parent=1 // pred_check
      _
    $region7: #{tpu_custom_call.1} parent=1 // pred_check_branch
      %20 = sbr.rel (0) target = $region9
    $region8: #{tpu_custom_call.1} parent=1 // pred_region
      _
    $region9: #{tpu_custom_call.1} parent=1 // pred_fallthru
      _
    // Predicated region
    $region10: #{tpu_custom_call.1} parent=1 // pred_check
      _
    $region11: #{tpu_custom_call.1} parent=1 // pred_check_branch
      %22 = sbr.rel (0) target = $region13
    $region12: #{tpu_custom_call.1} parent=1 // pred_region
      %23 = dma.done [#allocation3], 256
    $region13: #{tpu_custom_call.1} parent=1 // pred_fallthru
      _
    %v24 = vld [vmem:[#allocation2] sm:$0xff]
    %v25 = vld [vmem:[#allocation2 + $0x8] sm:$0xff]
    %v26 = vld [vmem:[%s1] sm:$0xff]
    %28 = vset.pattern.permute.xlu0 0
    %29 = vperm.xlu0 %28, %v26
    %v30 = vpop.permute.xlu0 %29
    %v32 = vmul.f32 %v24, %v30
    %v33 = vmul.f32 %v25, %v30
    %34 = vst [vmem:[#allocation5] sm:$0xff] %v32
    %35 = vst [vmem:[#allocation5 + $0x8] sm:$0xff] %v33
    // Predicated region
    $region14: #{tpu_custom_call.1} parent=1 // pred_check
      _
    $region15: #{tpu_custom_call.1} parent=1 // pred_check_branch
      %37 = sbr.rel (0) target = $region17
    $region16: #{tpu_custom_call.1} parent=1 // pred_region
      %s39 = ssub.s32 256, 256
      %40 = vsyncadd [#allocation4], %s39
      %s42 = sshll.u32 [#allocation5], 4
      %s43 = int_to_ptr.vmem [resolvable:$true] %s42
      %45 = dma.vmem_to_hbm [thread:$0]  %s43, 256, %s2, [#allocation4]
    $region17: #{tpu_custom_call.1} parent=1 // pred_fallthru
      _
    // Predicated region
    $region18: #{tpu_custom_call.1} parent=1 // pred_check
      _
    $region19: #{tpu_custom_call.1} parent=1 // pred_check_branch
      %47 = sbr.rel (0) target = $region21
    $region20: #{tpu_custom_call.1} parent=1 // pred_region
      %48 = dma.done [#allocation4], 256
    $region21: #{tpu_custom_call.1} parent=1 // pred_fallthru
      _
    %49 = vsyncpa [#allocation3], 1
    %50 = vsyncpa [#allocation4], 1

</llo_original>
